<compile_context>
chip_gen: v6e
topology: v6e:2x2x1
jax: 0.10.0
libtpu: 0.0.40
codegen_flags: <defaults>
</compile_context>

<pallas_src>
import jax
import jax.numpy as jnp
from jax.experimental import pallas as pl
from jax.experimental.pallas import tpu as pltpu

LANES = 128
TARGET_BLOCK_BYTES = 4 * 1024 * 1024   # ~4 MiB of HBM per input per pipeline buffer
MAX_TILE_ROWS = 16384                  # cap on tile height (code size / VMEM safety)
CHUNK_ROWS = 1024                      # in-kernel compute chunk (bounds f32 intermediates)
VMEM_LIMIT_CAP = 48 * 1024 * 1024      # headroom inside v7x's 64 MiB physical VMEM


def _round_up(x, m):
    return ((x + m - 1) // m) * m


def _num_parallel_cores():
    """TensorCores a Pallas 'parallel' grid axis can shard across on this chip."""
    try:
        kind = jax.devices()[0].device_kind.lower()
    except Exception:
        return 1
    # v5e / v6e are single-TensorCore; v4 / v5p (megacore) and v7x have 2.
    if "lite" in kind or "v5e" in kind or "v6e" in kind:
        return 1
    return 2


def _l1_sum_pallas(o2d, t2d):
    """Sum of |o - t| over a (rows, 128) slab. Returns (ncores*8, 128) partial sums."""
    rows = o2d.shape[0]
    o_item = jnp.dtype(o2d.dtype).itemsize
    t_item = jnp.dtype(t2d.dtype).itemsize

    # Sublane packing of the narrowest dtype: 8 rows (4B), 16 (2B), 32 (1B).
    pack = max(8, 32 // min(o_item, t_item))
    # Dtype-scaled tile: ~TARGET_BLOCK_BYTES of HBM per (widest) input per step.
    target_rows = max(
        pack, (TARGET_BLOCK_BYTES // (LANES * max(o_item, t_item))) // pack * pack
    )
    tile_rows = min(min(target_rows, MAX_TILE_ROWS), _round_up(rows, pack))

    tiles_total = pl.cdiv(rows, tile_rows)
    ncores = _num_parallel_cores() if tiles_total >= 2 else 1
    tiles_per_core = pl.cdiv(tiles_total, ncores)
    last_block = tiles_total - 1
    # Masking is only ever needed on tiles that overhang `rows` or on the
    # clamped duplicate tile when tiles don't split evenly across cores.
    needs_mask = (rows % tile_rows != 0) or (ncores * tiles_per_core != tiles_total)

    def in_index_map(c, j):
        # Clamp so no DMA ever starts out of bounds; the clamped duplicate
        # tiles are masked to contribute exactly 0 in the kernel.
        return (jnp.minimum(c * tiles_per_core + j, last_block), 0)

    def kernel(o_ref, t_ref, part_ref):
        c = pl.program_id(0)
        j = pl.program_id(1)

        @pl.when(j == 0)
        def _():
            part_ref[...] = jnp.zeros_like(part_ref)

        # Logical (unclamped) starting row of this tile.
        row0 = (c * tiles_per_core + j) * tile_rows

        def accumulate(masked):
            # Chunked so f32 intermediates stay small regardless of tile size.
            for c0 in range(0, tile_rows, CHUNK_ROWS):
                cl = min(CHUNK_ROWS, tile_rows - c0)
                d = jnp.abs(
                    o_ref[c0:c0 + cl, :].astype(jnp.float32)
                    - t_ref[c0:c0 + cl, :].astype(jnp.float32)
                )
                if masked:
                    r = jax.lax.broadcasted_iota(jnp.int32, (cl, LANES), 0) + c0
                    d = jnp.where(r < rows - row0, d, 0.0)
                # Elementwise VPU accumulation into the vreg-shaped output block.
                part_ref[...] += jnp.sum(d.reshape(cl // 8, 8, LANES), axis=0)

        if needs_mask:
            interior = row0 + tile_rows <= rows

            @pl.when(interior)
            def _():
                accumulate(False)   # full interior tile: no iota / select at all

            @pl.when(jnp.logical_not(interior))
            def _():
                accumulate(True)    # boundary or clamped-duplicate tile only
        else:
            accumulate(False)

    block_in_bytes = tile_rows * LANES * (o_item + t_item)
    vmem_limit = int(min(VMEM_LIMIT_CAP, 2 * block_in_bytes + (24 << 20)))

    return pl.pallas_call(
        kernel,
        out_shape=jax.ShapeDtypeStruct((ncores * 8, LANES), jnp.float32),
        grid_spec=pltpu.PrefetchScalarGridSpec(
            num_scalar_prefetch=0,
            grid=(ncores, tiles_per_core),
            in_specs=[
                pl.BlockSpec((tile_rows, LANES), in_index_map),
                pl.BlockSpec((tile_rows, LANES), in_index_map),
            ],
            # Lane-dense (8,128) partial-sum block per core; also the accumulator.
            out_specs=pl.BlockSpec((8, LANES), lambda c, j: (c, 0)),
        ),
        compiler_params=pltpu.CompilerParams(
            dimension_semantics=("parallel", "arbitrary"),
            vmem_limit_bytes=vmem_limit,
        ),
    )(o2d, t2d)


def l1_loss(output, target):
    """Equivalent of torch.abs(output - target).mean() for arbitrary-shape inputs."""
    assert output.shape == target.shape
    n = output.size
    out_dtype = jnp.result_type(output.dtype, target.dtype)

    o_flat = output.reshape(-1)
    t_flat = target.reshape(-1)

    rem = n % LANES
    if rem:
        # TODO(synk): zero-padding still costs one extra read+write pass over the
        # inputs when n % 128 != 0; a 1-D-block kernel with an in-kernel element
        # mask would remove that copy. Aligned sizes (the common case) are zero-copy.
        pad = LANES - rem
        o_flat = jnp.pad(o_flat, (0, pad))
        t_flat = jnp.pad(t_flat, (0, pad))

    rows = o_flat.size // LANES
    o2d = o_flat.reshape(rows, LANES)   # bitcast (contiguous), no HBM pass
    t2d = t_flat.reshape(rows, LANES)

    # Zero padding contributes |0 - 0| = 0 to the sum.
    partials = _l1_sum_pallas(o2d, t2d)
    total = jnp.sum(partials)
    # Plain f32 sequential accumulation: a few ULPs of drift vs f64 for huge n.
    return (total / jnp.float32(n)).astype(out_dtype)


if __name__ == "__main__":
    key = jax.random.PRNGKey(0)
    k1, k2, k3, k4 = jax.random.split(key, 4)

    loss_fn = jax.jit(l1_loss)

    # Flow-like tensors: batch=2, channels=4, spatial=16x16 (NCHW), lane-aligned.
    o1 = jax.random.normal(k1, (2, 4, 16, 16), dtype=jnp.float32)
    t1 = jax.random.normal(k2, (2, 4, 16, 16), dtype=jnp.float32)
    loss1 = jax.block_until_ready(loss_fn(o1, t1))
    ref1 = jnp.mean(jnp.abs(o1 - t1))
    assert jnp.allclose(loss1, ref1, rtol=1e-5, atol=1e-6), (loss1, ref1)

    # Ragged size (n % 128 != 0) exercises the padded / masked boundary path.
    o2 = jax.random.normal(k3, (2, 2, 11, 13), dtype=jnp.float32)
    t2 = jax.random.normal(k4, (2, 2, 11, 13), dtype=jnp.float32)
    loss2 = jax.block_until_ready(loss_fn(o2, t2))
    ref2 = jnp.mean(jnp.abs(o2 - t2))
    assert jnp.allclose(loss2, ref2, rtol=1e-5, atol=1e-6), (loss2, ref2)

    print("KERNEL_OK")
</pallas_src>

<mosaic_0001>
module attributes {stable_mosaic.version = 11 : i64} {
  func.func @kernel(%arg0: i32, %arg1: i32, %arg2: memref<16x128xf32, #tpu.memory_space<vmem>>, %arg3: memref<16x128xf32, #tpu.memory_space<vmem>>, %arg4: memref<8x128xf32, #tpu.memory_space<vmem>>) attributes {dimension_semantics = [#tpu.dimension_semantics<parallel>, #tpu.dimension_semantics<arbitrary>], iteration_bounds = array<i64: 1, 1>, scalar_prefetch = 0 : i64, scratch_operands = 0 : i64, tpu.core_type = #tpu.core_type<tc>, window_params = [{transform_indices = @transform_0, window_bounds = array<i64: 16, 128>}, {transform_indices = @transform_1, window_bounds = array<i64: 16, 128>}, {transform_indices = @transform_2, window_bounds = array<i64: 8, 128>}]} {
    %c0_i32 = arith.constant 0 : i32
    %0 = arith.cmpi eq, %arg1, %c0_i32 : i32
    %1 = arith.extui %0 : i1 to i32
    %c0_i32_0 = arith.constant 0 : i32
    %2 = arith.cmpi ne, %1, %c0_i32_0 : i32
    scf.if %2 {
      %cst_8 = arith.constant 0.000000e+00 : f32
      %12 = vector.broadcast %cst_8 : f32 to vector<8x128xf32>
      %c0_9 = arith.constant 0 : index
      %c0_10 = arith.constant 0 : index
      %13 = vector.load %arg4[%c0_9, %c0_10] : memref<8x128xf32, #tpu.memory_space<vmem>>, vector<8x128xf32>
      tpu.vector_store %arg4[%c0_9, %c0_10], %12 {strides = array<i32>} : memref<8x128xf32, #tpu.memory_space<vmem>>, vector<8x128xf32>,
    } else {
    }
    %c0 = arith.constant 0 : index
    %c0_1 = arith.constant 0 : index
    %3 = vector.load %arg2[%c0, %c0_1] : memref<16x128xf32, #tpu.memory_space<vmem>>, vector<16x128xf32>
    %c0_2 = arith.constant 0 : index
    %c0_3 = arith.constant 0 : index
    %4 = vector.load %arg3[%c0_2, %c0_3] : memref<16x128xf32, #tpu.memory_space<vmem>>, vector<16x128xf32>
    %5 = arith.subf %3, %4 : vector<16x128xf32>
    %6 = math.absf %5 : vector<16x128xf32>
    %c0_4 = arith.constant 0 : index
    %c0_5 = arith.constant 0 : index
    %7 = vector.load %arg4[%c0_4, %c0_5] : memref<8x128xf32, #tpu.memory_space<vmem>>, vector<8x128xf32>
    %8 = vector.shape_cast %6 : vector<16x128xf32> to vector<2x8x128xf32>
    %cst = arith.constant dense<0.000000e+00> : vector<8x128xf32>
    %9 = vector.multi_reduction <add>, %8, %cst [0] : vector<2x8x128xf32> to vector<8x128xf32>
    %10 = arith.addf %7, %9 : vector<8x128xf32>
    %c0_6 = arith.constant 0 : index
    %c0_7 = arith.constant 0 : index
    %11 = vector.load %arg4[%c0_6, %c0_7] : memref<8x128xf32, #tpu.memory_space<vmem>>, vector<8x128xf32>
    tpu.vector_store %arg4[%c0_6, %c0_7], %10 {strides = array<i32>} : memref<8x128xf32, #tpu.memory_space<vmem>>, vector<8x128xf32>,
    return
  }
  func.func @transform_0(%arg0: i32, %arg1: i32) -> (i32, i32) {
    %c1_i32 = arith.constant 1 : i32
    %0 = arith.muli %arg0, %c1_i32 : i32
    %1 = arith.addi %0, %arg1 : i32
    %c0_i32 = arith.constant 0 : i32
    %2 = arith.minsi %1, %c0_i32 : i32
    %c0_i32_0 = arith.constant 0 : i32
    %c0_i32_1 = arith.constant 0 : i32
    return %2, %c0_i32_0 : i32, i32
  }
  func.func @transform_1(%arg0: i32, %arg1: i32) -> (i32, i32) {
    %c1_i32 = arith.constant 1 : i32
    %0 = arith.muli %arg0, %c1_i32 : i32
    %1 = arith.addi %0, %arg1 : i32
    %c0_i32 = arith.constant 0 : i32
    %2 = arith.minsi %1, %c0_i32 : i32
    %c0_i32_0 = arith.constant 0 : i32
    %c0_i32_1 = arith.constant 0 : i32
    return %2, %c0_i32_0 : i32, i32
  }
  func.func @transform_2(%arg0: i32, %arg1: i32) -> (i32, i32) {
    %c0_i32 = arith.constant 0 : i32
    %c0_i32_0 = arith.constant 0 : i32
    return %arg0, %c0_i32 : i32, i32
  }
}

</mosaic_0001>

<llo_original>
// kernel: l1_loss.1
$region0: #{l1_loss.1}
  #allocation0 [shape = 'u32[]', space=smem, size = 0x4, offset = 0x4, fixed_abs, tag = 'smem constant byte address 0x4 - core index']
  #allocation1 [shape = 'u32[144,128]{1,0:T(1,128)}', space=vmem, size = 0x12000, scoped, tag = 'internal scratch']
  %s0 = inlined_call_operand.vmem [shape: f32[16,128], index: 0, kind: input, shape index: {}]
  %s1 = inlined_call_operand.vmem [shape: f32[16,128], index: 1, kind: input, shape index: {}]
  %s2 = inlined_call_operand.vmem [shape: f32[8,128], index: 2, kind: output, shape index: {}]
  %s3 = sld [smem:[#allocation0]]
  $region22: #{l1_loss.1} parent=0
    _
  %s5 = ssub.s32 1, %s3
  %s6 = scalar_select 0, %s5, %s3
  // Predicated region
  $region2: #{l1_loss.1} parent=0 // pred_check
    _
  $region3: #{l1_loss.1} parent=0 // pred_check_branch
    %8 = sbr.rel (0) target = $region5
  $region4: #{l1_loss.1} parent=0 // pred_region
    %s9 = sadd.s32 0, 0
    %p10 = scmp.lt.s32.totalorder %s9, 0
    %s11 = scalar_select %p10, %s9, 0
    %s12 = smul.u32 2, %s11
    %p13 = scmp.lt.s32.totalorder %s12, 1
    %s14 = scalar_select %p13, %s12, 1
    %s15 = smul.addr %s14, 8
    %s16 = scalar_lea.vmem %s0, %s15
    %s17 = sadd.s32 0, 0
    %p18 = scmp.lt.s32.totalorder %s17, 0
    %s19 = scalar_select %p18, %s17, 0
    %s20 = smul.u32 2, %s19
  $region5: #{l1_loss.1} parent=0 // pred_fallthru
    _
  // Predicated region
  $region6: #{l1_loss.1} parent=0 // pred_check
    _
  $region7: #{l1_loss.1} parent=0 // pred_check_branch
    %22 = sbr.rel (0) target = $region9
  $region8: #{l1_loss.1} parent=0 // pred_region
    %s23 = sadd.s32 0, 0
    %p24 = scmp.lt.s32.totalorder %s23, 0
    %s25 = scalar_select %p24, %s23, 0
    %s26 = smul.u32 2, %s25
    %p27 = scmp.lt.s32.totalorder %s26, 1
    %s28 = scalar_select %p27, %s26, 1
    %s29 = smul.addr %s28, 8
    %s30 = scalar_lea.vmem %s1, %s29
    %s31 = sadd.s32 0, 0
    %p32 = scmp.lt.s32.totalorder %s31, 0
    %s33 = scalar_select %p32, %s31, 0
    %s34 = smul.u32 2, %s33
  $region9: #{l1_loss.1} parent=0 // pred_fallthru
    _
  %s35 = sadd.s32 0, 0
  %p36 = scmp.lt.s32.totalorder %s35, 0
  %s37 = scalar_select %p36, %s35, 0
  %s38 = smul.u32 2, %s37
  %p39 = scmp.lt.s32.totalorder %s38, 1
  %s40 = scalar_select %p39, %s38, 1
  %s41 = smul.addr %s40, 8
  %s42 = scalar_lea.vmem %s0, %s41
  %s43 = sadd.s32 0, 0
  %p44 = scmp.lt.s32.totalorder %s43, 0
  %s45 = scalar_select %p44, %s43, 0
  %s46 = smul.u32 2, %s45
  %p47 = scmp.lt.s32.totalorder %s46, 1
  %s48 = scalar_select %p47, %s46, 1
  %s49 = smul.addr %s48, 8
  %s50 = scalar_lea.vmem %s1, %s49
  %s51 = sadd.s32 0, 0
  %p52 = scmp.lt.s32.totalorder %s51, 0
  %s53 = scalar_select %p52, %s51, 0
  %s54 = smul.u32 2, %s53
  %p55 = scmp.lt.s32.totalorder %s54, 1
  %s56 = scalar_select %p55, %s54, 1
  %s57 = smul.addr %s56, 8
  %s58 = scalar_lea.vmem %s0, %s57
  %s59 = sadd.s32 0, 0
  %p60 = scmp.lt.s32.totalorder %s59, 0
  %s61 = scalar_select %p60, %s59, 0
  %s62 = smul.u32 2, %s61
  %s63 = sadd.s32 0, 0
  %p64 = scmp.lt.s32.totalorder %s63, 0
  %s65 = scalar_select %p64, %s63, 0
  %s66 = smul.u32 2, %s65
  %p67 = scmp.lt.s32.totalorder %s66, 1
  %s68 = scalar_select %p67, %s66, 1
  %s69 = smul.addr %s68, 8
  %s70 = scalar_lea.vmem %s1, %s69
  %s71 = sadd.s32 0, 0
  %p72 = scmp.lt.s32.totalorder %s71, 0
  %s73 = scalar_select %p72, %s71, 0
  %s74 = smul.u32 2, %s73
  %p75 = scmp.eq.s32.totalorder 0, 0
  // Predicated region
  $region10: #{l1_loss.1} parent=0 // pred_check
    %p76 = pneg %p75
  $region11: #{l1_loss.1} parent=0 // pred_check_branch
    %78 = sbr.rel (%p76) target = $region13
  $region12: #{l1_loss.1} parent=0 // pred_region
    %79 = vst [vmem:[%s2] sm:$0xff] 0.0
  $region13: #{l1_loss.1} parent=0 // pred_fallthru
    _
  %v80 = vld [vmem:[%s58] sm:$0xff]
  %v81 = vld [vmem:[%s58 + $0x8] sm:$0xff]
  %v82 = vld [vmem:[%s70] sm:$0xff]
  %v83 = vld [vmem:[%s70 + $0x8] sm:$0xff]
  %v84 = vsub.f32 %v80, %v82
  %v85 = vsub.f32 %v81, %v83
  %v86 = vand.u32 2147483647, %v84
  %v87 = vand.u32 2147483647, %v85
  %v88 = vld [vmem:[%s2] sm:$0xff]
  %v89 = vadd.f32 %v86, %v87
  %v90 = vadd.f32 %v88, %v89
  %91 = vst [vmem:[%s2] sm:$0xff] %v90
  // Predicated region
  $region14: #{l1_loss.1} parent=0 // pred_check
    _
  $region15: #{l1_loss.1} parent=0 // pred_check_branch
    %93 = sbr.rel (0) target = $region17
  $region16: #{l1_loss.1} parent=0 // pred_region
    _
  $region17: #{l1_loss.1} parent=0 // pred_fallthru
    _
  // Predicated region
  $region18: #{l1_loss.1} parent=0 // pred_check
    _
  $region19: #{l1_loss.1} parent=0 // pred_check_branch
    %95 = sbr.rel (0) target = $region21
  $region20: #{l1_loss.1} parent=0 // pred_region
    _
  $region21: #{l1_loss.1} parent=0 // pred_fallthru
    _

</llo_original>
